<compile_context>
chip_gen: v7x
topology: tpu7x:2x2x1
jax: 0.10.0
libtpu: 0.0.40
codegen_flags: <defaults>
</compile_context>

<pallas_src>
import jax
import jax.numpy as jnp
from jax.experimental import pallas as pl
from jax.experimental.pallas import tpu as pltpu

LEAKY_RATE = 0.1

_LANE = 128
_VPU_CIN_MAX = 32                  # below this, skip the MXU and use VPU FMAs
_TL_MAX = 1024                     # 512+ lane tiles already hit ~85% of roofline
_VMEM_BUDGET = 20 * 1024 * 1024    # keep tiles well under the scoped limit
_VMEM_LIMIT = 48 * 1024 * 1024


def _bias_conv1d_kernel(w_ref, x_ref, b_ref, o_ref):
    # w_ref : (Cout, Cin)     resident weight (block index constant)
    # x_ref : (Bt, Cin, TL)   Bt batch elements, one length tile
    # b_ref : (Cout, TL)      bias tile (shared across the batch axis)
    # o_ref : (Bt, Cout, TL)
    bt, cin, _ = x_ref.shape
    w = w_ref[...]
    bias = b_ref[...]

    if cin <= _VPU_CIN_MAX:
        # Hoist the weight-column slices out of the batch loop (slices are not
        # free views on TPU; no need to re-materialize them Bt times).
        w_cols = [w[:, c:c + 1] for c in range(cin)]

    for b in range(bt):                      # static unroll, bt <= 8
        xb = x_ref[b]                        # (Cin, TL)
        if cin <= _VPU_CIN_MAX:
            # Small contraction depth: unrolled broadcast-FMAs on the VPU.
            y = bias
            for c in range(cin):
                y = y + w_cols[c] * xb[c:c + 1, :]
        else:
            y = jnp.dot(w, xb, preferred_element_type=jnp.float32) + bias
        # LeakyReLU(0.1): one vmul + one vmax (valid since LEAKY_RATE < 1).
        y = jnp.maximum(y, LEAKY_RATE * y)
        o_ref[b] = y.astype(o_ref.dtype)


def _tile_vmem_bytes(bt, tl, cin, cout, itemsize=4):
    # double-buffered x / bias / out tiles + double-buffered resident weight
    return itemsize * (2 * bt * cin * tl + 2 * cout * tl
                       + 2 * bt * cout * tl + 2 * cout * cin)


def _pick_tiles(b, l, cin, cout):
    bt_cands = [v for v in (8, 4, 2, 1) if b % v == 0]
    if l < _LANE:
        # Single full-dim (masked) tile; problem is tiny in the lane axis.
        tl_cands = [l]
    else:
        # Lane-dense tiles (multiples of 128); the ragged tail tile (if any)
        # is handled by Pallas store masking.
        tl_top = min((l // _LANE) * _LANE, _TL_MAX)
        tl_cands = list(range(tl_top, _LANE - 1, -_LANE))
    for tl in tl_cands:                      # prefer the widest lane tile
        for bt in bt_cands:                  # then the most batch fusion
            if _tile_vmem_bytes(bt, tl, cin, cout) <= _VMEM_BUDGET:
                return bt, tl
    return bt_cands[-1], tl_cands[-1]


def bias_conv1d(x, weight, bias):
    """x: (B, Cin, L), weight: (Cout, Cin), bias: (Cout, L) -> (B, Cout, L)."""
    B, Cin, L = x.shape
    Cout = weight.shape[0]
    assert weight.shape == (Cout, Cin)
    assert bias.shape == (Cout, L)

    Bt, TL = _pick_tiles(B, L, Cin, Cout)
    grid = (pl.cdiv(L, TL), B // Bt)         # L outer, batch innermost

    out = pl.pallas_call(
        _bias_conv1d_kernel,
        out_shape=jax.ShapeDtypeStruct((B, Cout, L), x.dtype),
        grid_spec=pltpu.PrefetchScalarGridSpec(
            num_scalar_prefetch=0,
            grid=grid,
            in_specs=[
                pl.BlockSpec((Cout, Cin), lambda l, b: (0, 0)),       # weight
                pl.BlockSpec((Bt, Cin, TL), lambda l, b: (b, 0, l)),  # x tile
                pl.BlockSpec((Cout, TL), lambda l, b: (0, l)),        # bias
            ],
            out_specs=pl.BlockSpec((Bt, Cout, TL), lambda l, b: (b, 0, l)),
        ),
        compiler_params=pltpu.CompilerParams(
            dimension_semantics=("parallel", "parallel"),
            vmem_limit_bytes=_VMEM_LIMIT,
        ),
        cost_estimate=pl.CostEstimate(
            flops=2 * B * Cout * Cin * L,
            transcendentals=0,
            bytes_accessed=4 * (B * Cin * L + B * Cout * L
                                + Cout * Cin + Cout * L),
        ),
    )(weight, x, bias)
    return out


def reference_bias_conv1d(x, weight, bias):
    """Pure-JAX reference matching the PyTorch forward exactly."""
    y = jnp.einsum("oc,bcl->bol", weight, x,
                   precision=jax.lax.Precision.HIGHEST) + bias[None, :, :]
    return jnp.where(y > 0, y, LEAKY_RATE * y)


if __name__ == "__main__":
    # First case matches the demo-sized module config (VPU-FMA path, full-dim
    # L block since L < 128); second exercises the MXU path, a ragged boundary
    # L tile (520 = 512 + 8) and batch fusion.
    test_cases = [
        (2, 4, 8, 16),
        (4, 64, 16, 520),
    ]

    key = jax.random.PRNGKey(0)
    for (B, Cin, Cout, L) in test_cases:
        key, kx, kw, kb = jax.random.split(key, 4)
        x = jax.random.normal(kx, (B, Cin, L), dtype=jnp.float32)
        # Conv1d weight (out_channels, in_channels, kernel_size=1) -> squeezed.
        weight = jax.random.normal(kw, (Cout, Cin), dtype=jnp.float32) * 0.1
        # self.bias = nn.Parameter(torch.randn((out_channels, bias_length)))
        bias = jax.random.normal(kb, (Cout, L), dtype=jnp.float32)

        out = jax.block_until_ready(bias_conv1d(x, weight, bias))
        ref = reference_bias_conv1d(x, weight, bias)
        assert out.shape == (B, Cout, L)
        assert jnp.allclose(out, ref, atol=1e-4, rtol=1e-4), \
            f"mismatch vs reference for (B, Cin, Cout, L)={(B, Cin, Cout, L)}"

    print("KERNEL_OK")
</pallas_src>

<mosaic_0001>
module attributes {stable_mosaic.version = 11 : i64} {
  func.func @_bias_conv1d_kernel(%arg0: i32, %arg1: i32, %arg2: memref<8x4xf32, #tpu.memory_space<vmem>>, %arg3: memref<2x4x16xf32, #tpu.memory_space<vmem>>, %arg4: memref<8x16xf32, #tpu.memory_space<vmem>>, %arg5: memref<2x8x16xf32, #tpu.memory_space<vmem>>) attributes {dimension_semantics = [#tpu.dimension_semantics<parallel>, #tpu.dimension_semantics<parallel>], iteration_bounds = array<i64: 1, 1>, scalar_prefetch = 0 : i64, scratch_operands = 0 : i64, tpu.core_type = #tpu.core_type<tc>, window_params = [{pipeline_mode = #tpu.pipeline_mode<synchronous>, transform_indices = @transform_0, window_bounds = array<i64: 8, 4>}, {transform_indices = @transform_1, window_bounds = array<i64: 2, 4, 16>}, {transform_indices = @transform_2, window_bounds = array<i64: 8, 16>}, {transform_indices = @transform_3, window_bounds = array<i64: 2, 8, 16>}]} {
    %c0 = arith.constant 0 : index
    %c0_0 = arith.constant 0 : index
    %0 = vector.load %arg2[%c0, %c0_0] : memref<8x4xf32, #tpu.memory_space<vmem>>, vector<8x4xf32>
    %c0_1 = arith.constant 0 : index
    %c0_2 = arith.constant 0 : index
    %1 = vector.load %arg4[%c0_1, %c0_2] : memref<8x16xf32, #tpu.memory_space<vmem>>, vector<8x16xf32>
    %2 = vector.extract_strided_slice %0 {offsets = [0, 0], sizes = [8, 1], strides = [1, 1]} : vector<8x4xf32> to vector<8x1xf32>
    %3 = vector.extract_strided_slice %0 {offsets = [0, 1], sizes = [8, 1], strides = [1, 1]} : vector<8x4xf32> to vector<8x1xf32>
    %4 = vector.extract_strided_slice %0 {offsets = [0, 2], sizes = [8, 1], strides = [1, 1]} : vector<8x4xf32> to vector<8x1xf32>
    %5 = vector.extract_strided_slice %0 {offsets = [0, 3], sizes = [8, 1], strides = [1, 1]} : vector<8x4xf32> to vector<8x1xf32>
    %c0_3 = arith.constant 0 : index
    %c0_4 = arith.constant 0 : index
    %c0_5 = arith.constant 0 : index
    %6 = vector.load %arg3[%c0_3, %c0_4, %c0_5] : memref<2x4x16xf32, #tpu.memory_space<vmem>>, vector<1x4x16xf32>
    %7 = vector.shape_cast %6 : vector<1x4x16xf32> to vector<4x16xf32>
    %8 = vector.extract_strided_slice %7 {offsets = [0, 0], sizes = [1, 16], strides = [1, 1]} : vector<4x16xf32> to vector<1x16xf32>
    %9 = vector.broadcast %2 : vector<8x1xf32> to vector<8x16xf32>
    %10 = vector.broadcast %8 : vector<1x16xf32> to vector<8x16xf32>
    %11 = arith.mulf %9, %10 : vector<8x16xf32>
    %12 = arith.addf %1, %11 : vector<8x16xf32>
    %13 = vector.extract_strided_slice %7 {offsets = [1, 0], sizes = [1, 16], strides = [1, 1]} : vector<4x16xf32> to vector<1x16xf32>
    %14 = vector.broadcast %3 : vector<8x1xf32> to vector<8x16xf32>
    %15 = vector.broadcast %13 : vector<1x16xf32> to vector<8x16xf32>
    %16 = arith.mulf %14, %15 : vector<8x16xf32>
    %17 = arith.addf %12, %16 : vector<8x16xf32>
    %18 = vector.extract_strided_slice %7 {offsets = [2, 0], sizes = [1, 16], strides = [1, 1]} : vector<4x16xf32> to vector<1x16xf32>
    %19 = vector.broadcast %4 : vector<8x1xf32> to vector<8x16xf32>
    %20 = vector.broadcast %18 : vector<1x16xf32> to vector<8x16xf32>
    %21 = arith.mulf %19, %20 : vector<8x16xf32>
    %22 = arith.addf %17, %21 : vector<8x16xf32>
    %23 = vector.extract_strided_slice %7 {offsets = [3, 0], sizes = [1, 16], strides = [1, 1]} : vector<4x16xf32> to vector<1x16xf32>
    %24 = vector.broadcast %5 : vector<8x1xf32> to vector<8x16xf32>
    %25 = vector.broadcast %23 : vector<1x16xf32> to vector<8x16xf32>
    %26 = arith.mulf %24, %25 : vector<8x16xf32>
    %27 = arith.addf %22, %26 : vector<8x16xf32>
    %cst = arith.constant 1.000000e-01 : f32
    %28 = vector.broadcast %cst : f32 to vector<8x16xf32>
    %29 = arith.mulf %28, %27 : vector<8x16xf32>
    %30 = arith.maximumf %27, %29 : vector<8x16xf32>
    %c0_6 = arith.constant 0 : index
    %c0_7 = arith.constant 0 : index
    %c0_8 = arith.constant 0 : index
    %31 = vector.load %arg5[%c0_6, %c0_7, %c0_8] : memref<2x8x16xf32, #tpu.memory_space<vmem>>, vector<1x8x16xf32>
    %32 = vector.shape_cast %31 : vector<1x8x16xf32> to vector<8x16xf32>
    %33 = vector.shape_cast %30 : vector<8x16xf32> to vector<1x8x16xf32>
    tpu.vector_store %arg5[%c0_6, %c0_7, %c0_8], %33 {strides = array<i32>} : memref<2x8x16xf32, #tpu.memory_space<vmem>>, vector<1x8x16xf32>,
    %c1 = arith.constant 1 : index
    %c0_9 = arith.constant 0 : index
    %c0_10 = arith.constant 0 : index
    %34 = vector.load %arg3[%c1, %c0_9, %c0_10] : memref<2x4x16xf32, #tpu.memory_space<vmem>>, vector<1x4x16xf32>
    %35 = vector.shape_cast %34 : vector<1x4x16xf32> to vector<4x16xf32>
    %36 = vector.extract_strided_slice %35 {offsets = [0, 0], sizes = [1, 16], strides = [1, 1]} : vector<4x16xf32> to vector<1x16xf32>
    %37 = vector.broadcast %2 : vector<8x1xf32> to vector<8x16xf32>
    %38 = vector.broadcast %36 : vector<1x16xf32> to vector<8x16xf32>
    %39 = arith.mulf %37, %38 : vector<8x16xf32>
    %40 = arith.addf %1, %39 : vector<8x16xf32>
    %41 = vector.extract_strided_slice %35 {offsets = [1, 0], sizes = [1, 16], strides = [1, 1]} : vector<4x16xf32> to vector<1x16xf32>
    %42 = vector.broadcast %3 : vector<8x1xf32> to vector<8x16xf32>
    %43 = vector.broadcast %41 : vector<1x16xf32> to vector<8x16xf32>
    %44 = arith.mulf %42, %43 : vector<8x16xf32>
    %45 = arith.addf %40, %44 : vector<8x16xf32>
    %46 = vector.extract_strided_slice %35 {offsets = [2, 0], sizes = [1, 16], strides = [1, 1]} : vector<4x16xf32> to vector<1x16xf32>
    %47 = vector.broadcast %4 : vector<8x1xf32> to vector<8x16xf32>
    %48 = vector.broadcast %46 : vector<1x16xf32> to vector<8x16xf32>
    %49 = arith.mulf %47, %48 : vector<8x16xf32>
    %50 = arith.addf %45, %49 : vector<8x16xf32>
    %51 = vector.extract_strided_slice %35 {offsets = [3, 0], sizes = [1, 16], strides = [1, 1]} : vector<4x16xf32> to vector<1x16xf32>
    %52 = vector.broadcast %5 : vector<8x1xf32> to vector<8x16xf32>
    %53 = vector.broadcast %51 : vector<1x16xf32> to vector<8x16xf32>
    %54 = arith.mulf %52, %53 : vector<8x16xf32>
    %55 = arith.addf %50, %54 : vector<8x16xf32>
    %cst_11 = arith.constant 1.000000e-01 : f32
    %56 = vector.broadcast %cst_11 : f32 to vector<8x16xf32>
    %57 = arith.mulf %56, %55 : vector<8x16xf32>
    %58 = arith.maximumf %55, %57 : vector<8x16xf32>
    %c1_12 = arith.constant 1 : index
    %c0_13 = arith.constant 0 : index
    %c0_14 = arith.constant 0 : index
    %59 = vector.load %arg5[%c1_12, %c0_13, %c0_14] : memref<2x8x16xf32, #tpu.memory_space<vmem>>, vector<1x8x16xf32>
    %60 = vector.shape_cast %59 : vector<1x8x16xf32> to vector<8x16xf32>
    %61 = vector.shape_cast %58 : vector<8x16xf32> to vector<1x8x16xf32>
    tpu.vector_store %arg5[%c1_12, %c0_13, %c0_14], %61 {strides = array<i32>} : memref<2x8x16xf32, #tpu.memory_space<vmem>>, vector<1x8x16xf32>,
    return
  }
  func.func @transform_0(%arg0: i32, %arg1: i32) -> (i32, i32) {
    %c0_i32 = arith.constant 0 : i32
    %c0_i32_0 = arith.constant 0 : i32
    %c0_i32_1 = arith.constant 0 : i32
    return %c0_i32, %c0_i32_0 : i32, i32
  }
  func.func @transform_1(%arg0: i32, %arg1: i32) -> (i32, i32, i32) {
    %c0_i32 = arith.constant 0 : i32
    %c0_i32_0 = arith.constant 0 : i32
    return %arg1, %c0_i32, %arg0 : i32, i32, i32
  }
  func.func @transform_2(%arg0: i32, %arg1: i32) -> (i32, i32) {
    %c0_i32 = arith.constant 0 : i32
    %c0_i32_0 = arith.constant 0 : i32
    return %c0_i32, %arg0 : i32, i32
  }
  func.func @transform_3(%arg0: i32, %arg1: i32) -> (i32, i32, i32) {
    %c0_i32 = arith.constant 0 : i32
    %c0_i32_0 = arith.constant 0 : i32
    return %arg1, %c0_i32, %arg0 : i32, i32, i32
  }
}

</mosaic_0001>

<llo_original>
// kernel: tpu_custom_call.1
$region0: #{tpu_custom_call.1}
  #allocation0 [shape = 'u32[]', space=smem, size = 0x4, offset = 0x4, fixed_abs, tag = 'smem constant byte address 0x4 - core index']
  #allocation1 [shape = 'u32[144,128]{1,0:T(1,128)}', space=vmem, size = 0x12000, scoped, tag = 'internal scratch']
  %s0 = inlined_call_operand.vmem [shape: f32[8,4], index: 0, kind: input, shape index: {}]
  %s1 = inlined_call_operand.vmem [shape: f32[2,4,16], index: 1, kind: input, shape index: {}]
  %s2 = inlined_call_operand.vmem [shape: f32[8,16], index: 2, kind: input, shape index: {}]
  %s3 = inlined_call_operand.hbm [shape: f32[2,8,16], index: 3, kind: output, shape index: {}]
  %s4 = sld [smem:[#allocation0]]
  $region22: #{tpu_custom_call.1} parent=0
    _
  %s6 = ssub.s32 1, %s4
  %s7 = scalar_select 0, %s6, %s4
  $region1: #{tpu_custom_call.1} parent=0
    #allocation2 [shape = 'u8[8192]{0}', space=vmem, size = 0x2000, scoped, tag = 'output window, operand 0, single buffered']
    #allocation3 [shape = 's32[1]{0}', space=sflag, size = 0x4, scoped, tag = 'scoped memory for tpu_custom_call.1']
    %8 = vsyncpa [#allocation3], 0
    // Predicated region
    $region2: #{tpu_custom_call.1} parent=1 // pred_check
      _
    $region3: #{tpu_custom_call.1} parent=1 // pred_check_branch
      %10 = sbr.rel (0) target = $region5
    $region4: #{tpu_custom_call.1} parent=1 // pred_region
      _
    $region5: #{tpu_custom_call.1} parent=1 // pred_fallthru
      _
    // Predicated region
    $region6: #{tpu_custom_call.1} parent=1 // pred_check
      _
    $region7: #{tpu_custom_call.1} parent=1 // pred_check_branch
      %12 = sbr.rel (0) target = $region9
    $region8: #{tpu_custom_call.1} parent=1 // pred_region
      _
    $region9: #{tpu_custom_call.1} parent=1 // pred_fallthru
      _
    // Predicated region
    $region10: #{tpu_custom_call.1} parent=1 // pred_check
      _
    $region11: #{tpu_custom_call.1} parent=1 // pred_check_branch
      %14 = sbr.rel (0) target = $region13
    $region12: #{tpu_custom_call.1} parent=1 // pred_region
      _
    $region13: #{tpu_custom_call.1} parent=1 // pred_fallthru
      _
    %v15 = vld [vmem:[%s0] sm:$0xff]
    %v16 = vld [vmem:[%s2] sm:$0xff]
    %v17 = vld [vmem:[%s1] sm:$0xf]
    %19 = vset.pattern.permute.xlu0 0
    %20 = vperm.xlu0 %19, %v15
    %v21 = vpop.permute.xlu0 %20
    %v23 = vlaneseq
    %v24 = vshrl.u32 %v23, 7
    %v25 = vsub.s32 0, %v24
    %v26 = vrot.slane %v17, %v25
    %v27 = vmul.f32 %v21, %v26
    %v28 = vadd.f32 %v16, %v27
    %29 = vset.pattern.permute.xlu0 1
    %30 = vperm.xlu0 %29, %v15
    %v31 = vpop.permute.xlu0 %30
    %v33 = vlaneseq
    %v34 = vshrl.u32 %v33, 7
    %v35 = vsub.s32 1, %v34
    %v36 = vrot.slane %v17, %v35
    %v37 = vmul.f32 %v31, %v36
    %v38 = vadd.f32 %v28, %v37
    %39 = vset.pattern.permute.xlu0 2
    %40 = vperm.xlu0 %39, %v15
    %v41 = vpop.permute.xlu0 %40
    %v43 = vlaneseq
    %v44 = vshrl.u32 %v43, 7
    %v45 = vsub.s32 2, %v44
    %v46 = vrot.slane %v17, %v45
    %v47 = vmul.f32 %v41, %v46
    %v48 = vadd.f32 %v38, %v47
    %49 = vset.pattern.permute.xlu0 3
    %50 = vperm.xlu0 %49, %v15
    %v51 = vpop.permute.xlu0 %50
    %v53 = vlaneseq
    %v54 = vshrl.u32 %v53, 7
    %v55 = vsub.s32 3, %v54
    %v56 = vrot.slane %v17, %v55
    %v57 = vmul.f32 %v51, %v56
    %v58 = vadd.f32 %v48, %v57
    %v59 = vmul.f32 %v58, 0.1
    %v60 = vmax.f32 %v58, %v59
    %vm61 = vcmask 130048
    %62 = vst.msk [vmem:[#allocation2] sm:$0xff] %vm61, %v60
    %s63 = scalar_lea.vmem %s1, 4
    %v64 = vld [vmem:[%s63] sm:$0xf]
    %v65 = vlaneseq
    %v66 = vshrl.u32 %v65, 7
    %v67 = vsub.s32 0, %v66
    %v68 = vrot.slane %v64, %v67
    %v69 = vmul.f32 %v21, %v68
    %v70 = vadd.f32 %v16, %v69
    %v71 = vlaneseq
    %v72 = vshrl.u32 %v71, 7
    %v73 = vsub.s32 1, %v72
    %v74 = vrot.slane %v64, %v73
    %v75 = vmul.f32 %v31, %v74
    %v76 = vadd.f32 %v70, %v75
    %v77 = vlaneseq
    %v78 = vshrl.u32 %v77, 7
    %v79 = vsub.s32 2, %v78
    %v80 = vrot.slane %v64, %v79
    %v81 = vmul.f32 %v41, %v80
    %v82 = vadd.f32 %v76, %v81
    %v83 = vlaneseq
    %v84 = vshrl.u32 %v83, 7
    %v85 = vsub.s32 3, %v84
    %v86 = vrot.slane %v64, %v85
    %v87 = vmul.f32 %v51, %v86
    %v88 = vadd.f32 %v82, %v87
    %v89 = vmul.f32 %v88, 0.1
    %v90 = vmax.f32 %v88, %v89
    %s91 = scalar_lea.vmem [#allocation2], 8
    %92 = vst.msk [vmem:[%s91] sm:$0xff] %vm61, %v90
    // Predicated region
    $region14: #{tpu_custom_call.1} parent=1 // pred_check
      _
    $region15: #{tpu_custom_call.1} parent=1 // pred_check_branch
      %94 = sbr.rel (0) target = $region17
    $region16: #{tpu_custom_call.1} parent=1 // pred_region
      %s96 = ssub.s32 256, 256
      %97 = vsyncadd [#allocation3], %s96
      %s98 = sshll.u32 [#allocation2], 4
      %s99 = int_to_ptr.vmem [resolvable:$true] %s98
      %104 = dma.vmem_to_hbm [thread:$0]  %s99, 256, %s3, [#allocation3], 128, 128, 8
    $region17: #{tpu_custom_call.1} parent=1 // pred_fallthru
      _
    // Predicated region
    $region18: #{tpu_custom_call.1} parent=1 // pred_check
      _
    $region19: #{tpu_custom_call.1} parent=1 // pred_check_branch
      %106 = sbr.rel (0) target = $region21
    $region20: #{tpu_custom_call.1} parent=1 // pred_region
      %107 = dma.done [#allocation3], 256
    $region21: #{tpu_custom_call.1} parent=1 // pred_fallthru
      _
    %108 = vsyncpa [#allocation3], 1

</llo_original>
